<compile_context>
chip_gen: v7x
topology: tpu7x:2x2x1
jax: 0.10.0
libtpu: 0.0.40
codegen_flags: <defaults>
</compile_context>

<pallas_src>
import functools

import jax
import jax.numpy as jnp
from jax.experimental import pallas as pl
from jax.experimental.pallas import tpu as pltpu

NUM_HEADS = 4          # the torch module fixes num_heads=4
LANE = 128             # TPU lane width
SUBLANE = 8
BLOCK_BYTES = 1 << 20  # target bytes per activation block (amortizes per-step overhead)


def _fused_seg_kernel(xq_ref, xkv_ref, wf_ref, mseg_ref, vecs_ref, out_ref):
    """Packed path (LANE % H == 0): pack = 128 // H nodes per 128-lane row.

    out = LayerNorm_H( xkv @ W_f + b_f + xq )  per H-lane group.

    W_f is the block-diagonal fused (V-proj o out-proj) weight; mseg is the
    [HP, HP] segment-mean matrix (1/H inside each H-lane group) so per-node
    LayerNorm statistics come from two cheap MXU matmuls instead of masked
    cross-lane reductions.
    """
    xq = xq_ref[...].astype(jnp.float32)
    xkv = xkv_ref[...].astype(jnp.float32)
    mseg = mseg_ref[...]
    b_f = vecs_ref[0:1, :]
    gamma = vecs_ref[1:2, :]
    beta = vecs_ref[2:3, :]

    y = jnp.dot(xkv, wf_ref[...], preferred_element_type=jnp.float32) + b_f + xq
    mean = jnp.dot(y, mseg, preferred_element_type=jnp.float32)      # group mean, broadcast
    c = y - mean
    var = jnp.dot(c * c, mseg, preferred_element_type=jnp.float32)   # group variance
    out = c * jax.lax.rsqrt(var + jnp.float32(1e-5)) * gamma + beta
    out_ref[...] = out.astype(out_ref.dtype)


def _fused_pad_kernel(xq_ref, xkv_ref, wf_ref, vecs_ref, out_ref, *, inv_h):
    """Fallback path (H does not divide 128): one node per row, lane-padded to HP.

    Padded lanes of xq/xkv/W_f/b_f are exactly zero, so full-lane sums equal
    true-channel sums; a lane mask keeps the variance uncontaminated.
    """
    xq = xq_ref[...].astype(jnp.float32)
    xkv = xkv_ref[...].astype(jnp.float32)
    b_f = vecs_ref[0:1, :]
    gamma = vecs_ref[1:2, :]
    beta = vecs_ref[2:3, :]
    mask = vecs_ref[3:4, :]

    y = jnp.dot(xkv, wf_ref[...], preferred_element_type=jnp.float32) + b_f + xq
    mean = jnp.sum(y, axis=-1, keepdims=True) * inv_h
    c = (y - mean) * mask
    var = jnp.sum(c * c, axis=-1, keepdims=True) * inv_h
    out = c * jax.lax.rsqrt(var + jnp.float32(1e-5)) * gamma + beta
    out_ref[...] = out.astype(out_ref.dtype)


@functools.partial(jax.jit, static_argnames=("block_bytes",))
def cross_view_attention(ego_features, cut_features, params, *, block_bytes=BLOCK_BYTES):
    """Mirrors CrossViewAttention.forward: returns (ego_attended, cut_attended)."""
    n, h = ego_features.shape
    hp = params["w_f"].shape[0]
    packed = (LANE % h == 0)
    pack = LANE // h if packed else 1
    itemsize = jnp.dtype(ego_features.dtype).itemsize

    # Row tiling of the packed [rows, HP] layout: ~block_bytes per activation block,
    # 8-row aligned, at most 7 rows of padding per tile.
    rows = pl.cdiv(n, pack)
    max_tile = max(SUBLANE, (block_bytes // (hp * itemsize)) // SUBLANE * SUBLANE)
    tiles = pl.cdiv(rows, max_tile)
    tn = pl.cdiv(pl.cdiv(rows, tiles), SUBLANE) * SUBLANE
    rows_pad = tn * tiles

    # Single stacked copy: branch 0 = (q=ego, kv=cut) -> norm1; branch 1 = reverse -> norm2.
    x = jnp.stack([ego_features, cut_features])                    # [2, N, H]
    x = jnp.pad(x, ((0, 0), (0, rows_pad * pack - n), (0, 0)))
    x = x.reshape(2, rows_pad, pack * h)
    if pack * h < hp:                                              # lane pad (fallback path only)
        x = jnp.pad(x, ((0, 0), (0, 0), (0, hp - pack * h)))

    q_spec = pl.BlockSpec((None, tn, hp), lambda b, i: (b, i, 0))
    kv_spec = pl.BlockSpec((None, tn, hp), lambda b, i: (1 - b, i, 0))  # same array, other branch
    w_spec = pl.BlockSpec((hp, hp), lambda b, i: (0, 0))                # resident across the grid
    vec_spec = pl.BlockSpec((None, 8, hp), lambda b, i: (b, 0, 0))

    if packed:
        kernel = _fused_seg_kernel
        in_specs = [q_spec, kv_spec, w_spec, w_spec, vec_spec]
        operands = (x, x, params["w_f"], params["mseg"], params["vecs"])
        n_weights = 2
    else:
        kernel = functools.partial(_fused_pad_kernel, inv_h=1.0 / h)
        in_specs = [q_spec, kv_spec, w_spec, vec_spec]
        operands = (x, x, params["w_f"], params["vecs"])
        n_weights = 1

    # Explicit VMEM budget: double-buffered activation blocks + resident weights,
    # ~2x headroom for kernel-internal temporaries; capped for v7x's 64 MiB.
    vmem_need = 2 * (3 * tn * hp * itemsize + (n_weights * hp * hp + 16 * hp) * 4)
    vmem_limit = int(min(2 * vmem_need + (8 << 20), 64 << 20))

    out = pl.pallas_call(
        kernel,
        out_shape=jax.ShapeDtypeStruct((2, rows_pad, hp), ego_features.dtype),
        grid=(2, tiles),
        in_specs=in_specs,
        out_specs=pl.BlockSpec((None, tn, hp), lambda b, i: (b, i, 0)),
        compiler_params=pltpu.CompilerParams(
            dimension_semantics=("parallel", "parallel"),
            vmem_limit_bytes=vmem_limit,
        ),
    )(*operands)

    if packed:
        out = out.reshape(2, rows_pad * pack, h)[:, :n, :]
    else:
        out = out[:, :n, :h]
    return out[0], out[1]


def init_params(hidden_channels, key):
    """Deterministic synthetic parameters matching the torch module's shapes,
    pre-fused / pre-packed for the kernel, plus unfused copies for the reference.
    (If weights come from a checkpoint, route them through this same packing so the
    padded rows/cols stay exactly zero.)"""
    h = hidden_channels
    assert h % NUM_HEADS == 0
    k = jax.random.split(key, 4)
    scale = 0.1
    # nn.MultiheadAttention: in_proj_weight [3H,H], in_proj_bias [3H],
    # out_proj.weight [H,H], out_proj.bias [H].  With seq_len == 1 only the V and
    # out-proj slices influence the output (softmax over one key == 1).
    in_proj_w = jax.random.normal(k[0], (3 * h, h), jnp.float32) * scale
    in_proj_b = jax.random.normal(k[1], (3 * h,), jnp.float32) * scale
    out_w = jax.random.normal(k[2], (h, h), jnp.float32) * scale
    out_b = jax.random.normal(k[3], (h,), jnp.float32) * scale

    wv = in_proj_w[2 * h:]          # [H, H]
    bv = in_proj_b[2 * h:]          # [H]

    # Exact algebraic fusion of V projection and output projection.
    w_f = wv.T @ out_w.T            # [H, H]
    b_f = bv @ out_w.T + out_b      # [H]

    # LayerNorm params (torch default init: weight=1, bias=0).
    ln1_g = jnp.ones((h,), jnp.float32); ln1_b = jnp.zeros((h,), jnp.float32)
    ln2_g = jnp.ones((h,), jnp.float32); ln2_b = jnp.zeros((h,), jnp.float32)

    packed = (LANE % h == 0)
    if packed:
        pack = LANE // h
        hp = LANE
        w_pad = jnp.kron(jnp.eye(pack, dtype=jnp.float32), w_f)   # block-diagonal [128,128]
        group = jnp.arange(hp) // h
        mseg = (group[:, None] == group[None, :]).astype(jnp.float32) / h
        lane_mask = jnp.ones((hp,), jnp.float32)
        vec = lambda v: jnp.tile(v, pack)
    else:
        pack = 1
        hp = pl.cdiv(h, LANE) * LANE
        w_pad = jnp.zeros((hp, hp), jnp.float32).at[:h, :h].set(w_f)
        mseg = None
        lane_mask = (jnp.arange(hp) < h).astype(jnp.float32)
        vec = lambda v: jnp.zeros((hp,), jnp.float32).at[:h].set(v)

    zeros = jnp.zeros((hp,), jnp.float32)

    def branch_vecs(g, b):
        # rows: [b_f, gamma, beta, lane_mask, 0, 0, 0, 0] -> [8, HP] (sublane aligned)
        return jnp.stack([vec(b_f), vec(g), vec(b), lane_mask,
                          zeros, zeros, zeros, zeros])

    params = {
        # kernel-side (fused, packed / padded)
        "w_f": w_pad,
        "vecs": jnp.stack([branch_vecs(ln1_g, ln1_b), branch_vecs(ln2_g, ln2_b)]),
        # unfused / unpadded copies for the pure-JAX reference
        "wv_t": wv.T, "bv": bv, "wo_t": out_w.T, "bo": out_b,
        "ln1_g": ln1_g, "ln1_b": ln1_b, "ln2_g": ln2_g, "ln2_b": ln2_b,
    }
    if packed:
        params["mseg"] = mseg
    return params


def _reference(ego, cut, p):
    """Pure-JAX reference reproducing the torch forward (seq_len == 1), unfused."""
    def branch(xq, xkv, gamma, beta):
        v = xkv @ p["wv_t"] + p["bv"]
        o = v @ p["wo_t"] + p["bo"]     # softmax over a single key == 1 -> context == v
        y = o + xq
        mean = jnp.mean(y, axis=-1, keepdims=True)
        var = jnp.mean(jnp.square(y - mean), axis=-1, keepdims=True)
        return (y - mean) * jax.lax.rsqrt(var + 1e-5) * gamma + beta
    return (branch(ego, cut, p["ln1_g"], p["ln1_b"]),
            branch(cut, ego, p["ln2_g"], p["ln2_b"]))


if __name__ == "__main__":
    configs = [
        (32, 8),      # hidden=32 (4 nodes packed per 128-lane row), 8 nodes -- the spec's shape
        (64, 50),     # packed path with a ragged node count
        (192, 17),    # fallback lane-padded path (192 does not divide 128)
    ]
    root = jax.random.PRNGKey(0)
    for hidden, n in configs:
        k_ego, k_cut, k_params = jax.random.split(
            jax.random.fold_in(root, hidden * 1000 + n), 3)
        ego = jax.random.normal(k_ego, (n, hidden), jnp.float32)
        cut = jax.random.normal(k_cut, (n, hidden), jnp.float32)
        params = init_params(hidden, k_params)

        ego_out, cut_out = cross_view_attention(ego, cut, params)
        jax.block_until_ready((ego_out, cut_out))

        ref_ego, ref_cut = _reference(ego, cut, params)
        assert ego_out.shape == (n, hidden) and cut_out.shape == (n, hidden)
        assert jnp.allclose(ego_out, ref_ego, atol=1e-4, rtol=1e-4), (hidden, n)
        assert jnp.allclose(cut_out, ref_cut, atol=1e-4, rtol=1e-4), (hidden, n)

    print("KERNEL_OK")
</pallas_src>

<mosaic_0001>
module attributes {stable_mosaic.version = 11 : i64} {
  func.func @_fused_seg_kernel(%arg0: i32, %arg1: i32, %arg2: memref<1x8x128xf32, #tpu.memory_space<vmem>>, %arg3: memref<1x8x128xf32, #tpu.memory_space<vmem>>, %arg4: memref<128x128xf32, #tpu.memory_space<vmem>>, %arg5: memref<128x128xf32, #tpu.memory_space<vmem>>, %arg6: memref<1x8x128xf32, #tpu.memory_space<vmem>>, %arg7: memref<1x8x128xf32, #tpu.memory_space<vmem>>) attributes {dimension_semantics = [#tpu.dimension_semantics<parallel>, #tpu.dimension_semantics<parallel>], iteration_bounds = array<i64: 2, 1>, scalar_prefetch = 0 : i64, scratch_operands = 0 : i64, tpu.core_type = #tpu.core_type<tc>, window_params = [{transform_indices = @transform_0, window_bounds = array<i64: 1, 8, 128>}, {transform_indices = @transform_1, window_bounds = array<i64: 1, 8, 128>}, {pipeline_mode = #tpu.pipeline_mode<synchronous>, transform_indices = @transform_2, window_bounds = array<i64: 128, 128>}, {pipeline_mode = #tpu.pipeline_mode<synchronous>, transform_indices = @transform_3, window_bounds = array<i64: 128, 128>}, {transform_indices = @transform_4, window_bounds = array<i64: 1, 8, 128>}, {transform_indices = @transform_5, window_bounds = array<i64: 1, 8, 128>}]} {
    %c0 = arith.constant 0 : index
    %c0_0 = arith.constant 0 : index
    %c0_1 = arith.constant 0 : index
    %0 = vector.load %arg2[%c0, %c0_0, %c0_1] : memref<1x8x128xf32, #tpu.memory_space<vmem>>, vector<1x8x128xf32>
    %1 = vector.shape_cast %0 : vector<1x8x128xf32> to vector<8x128xf32>
    %c0_2 = arith.constant 0 : index
    %c0_3 = arith.constant 0 : index
    %c0_4 = arith.constant 0 : index
    %2 = vector.load %arg3[%c0_2, %c0_3, %c0_4] : memref<1x8x128xf32, #tpu.memory_space<vmem>>, vector<1x8x128xf32>
    %3 = vector.shape_cast %2 : vector<1x8x128xf32> to vector<8x128xf32>
    %c0_5 = arith.constant 0 : index
    %c0_6 = arith.constant 0 : index
    %4 = vector.load %arg5[%c0_5, %c0_6] : memref<128x128xf32, #tpu.memory_space<vmem>>, vector<128x128xf32>
    %c0_7 = arith.constant 0 : index
    %c0_8 = arith.constant 0 : index
    %c0_9 = arith.constant 0 : index
    %5 = vector.load %arg6[%c0_7, %c0_8, %c0_9] : memref<1x8x128xf32, #tpu.memory_space<vmem>>, vector<1x1x128xf32>
    %6 = vector.shape_cast %5 : vector<1x1x128xf32> to vector<1x128xf32>
    %c0_10 = arith.constant 0 : index
    %c1 = arith.constant 1 : index
    %c0_11 = arith.constant 0 : index
    %7 = vector.load %arg6[%c0_10, %c1, %c0_11] : memref<1x8x128xf32, #tpu.memory_space<vmem>>, vector<1x1x128xf32>
    %8 = vector.shape_cast %7 : vector<1x1x128xf32> to vector<1x128xf32>
    %c0_12 = arith.constant 0 : index
    %c2 = arith.constant 2 : index
    %c0_13 = arith.constant 0 : index
    %9 = vector.load %arg6[%c0_12, %c2, %c0_13] : memref<1x8x128xf32, #tpu.memory_space<vmem>>, vector<1x1x128xf32>
    %10 = vector.shape_cast %9 : vector<1x1x128xf32> to vector<1x128xf32>
    %c0_14 = arith.constant 0 : index
    %c0_15 = arith.constant 0 : index
    %11 = vector.load %arg4[%c0_14, %c0_15] : memref<128x128xf32, #tpu.memory_space<vmem>>, vector<128x128xf32>
    %cst = arith.constant dense<0.000000e+00> : vector<8x128xf32>
    %12 = tpu.matmul %3, %11, %cst {dimension_numbers = #tpu.dot_dimension_numbers<[1], [0], [0], [1], [0, 0, 1, 1], [], []>} : vector<8x128xf32>, vector<128x128xf32>, vector<8x128xf32> -> vector<8x128xf32>
    %13 = vector.broadcast %6 : vector<1x128xf32> to vector<8x128xf32>
    %14 = arith.addf %12, %13 : vector<8x128xf32>
    %15 = arith.addf %14, %1 : vector<8x128xf32>
    %cst_16 = arith.constant dense<0.000000e+00> : vector<8x128xf32>
    %16 = tpu.matmul %15, %4, %cst_16 {dimension_numbers = #tpu.dot_dimension_numbers<[1], [0], [0], [1], [0, 0, 1, 1], [], []>} : vector<8x128xf32>, vector<128x128xf32>, vector<8x128xf32> -> vector<8x128xf32>
    %17 = arith.subf %15, %16 : vector<8x128xf32>
    %18 = arith.mulf %17, %17 : vector<8x128xf32>
    %cst_17 = arith.constant dense<0.000000e+00> : vector<8x128xf32>
    %19 = tpu.matmul %18, %4, %cst_17 {dimension_numbers = #tpu.dot_dimension_numbers<[1], [0], [0], [1], [0, 0, 1, 1], [], []>} : vector<8x128xf32>, vector<128x128xf32>, vector<8x128xf32> -> vector<8x128xf32>
    %cst_18 = arith.constant 9.99999974E-6 : f32
    %20 = vector.broadcast %cst_18 : f32 to vector<8x128xf32>
    %21 = arith.addf %19, %20 : vector<8x128xf32>
    %22 = math.rsqrt %21 : vector<8x128xf32>
    %23 = arith.mulf %17, %22 : vector<8x128xf32>
    %24 = vector.broadcast %8 : vector<1x128xf32> to vector<8x128xf32>
    %25 = arith.mulf %23, %24 : vector<8x128xf32>
    %26 = vector.broadcast %10 : vector<1x128xf32> to vector<8x128xf32>
    %27 = arith.addf %25, %26 : vector<8x128xf32>
    %c0_19 = arith.constant 0 : index
    %c0_20 = arith.constant 0 : index
    %c0_21 = arith.constant 0 : index
    %28 = vector.load %arg7[%c0_19, %c0_20, %c0_21] : memref<1x8x128xf32, #tpu.memory_space<vmem>>, vector<1x8x128xf32>
    %29 = vector.shape_cast %28 : vector<1x8x128xf32> to vector<8x128xf32>
    %30 = vector.shape_cast %27 : vector<8x128xf32> to vector<1x8x128xf32>
    tpu.vector_store %arg7[%c0_19, %c0_20, %c0_21], %30 {strides = array<i32>} : memref<1x8x128xf32, #tpu.memory_space<vmem>>, vector<1x8x128xf32>,
    return
  }
  func.func @transform_0(%arg0: i32, %arg1: i32) -> (i32, i32, i32) {
    %c0_i32 = arith.constant 0 : i32
    %c0_i32_0 = arith.constant 0 : i32
    return %arg0, %arg1, %c0_i32 : i32, i32, i32
  }
  func.func @transform_1(%arg0: i32, %arg1: i32) -> (i32, i32, i32) {
    %c1_i32 = arith.constant 1 : i32
    %0 = arith.subi %c1_i32, %arg0 : i32
    %c0_i32 = arith.constant 0 : i32
    %c0_i32_0 = arith.constant 0 : i32
    return %0, %arg1, %c0_i32 : i32, i32, i32
  }
  func.func @transform_2(%arg0: i32, %arg1: i32) -> (i32, i32) {
    %c0_i32 = arith.constant 0 : i32
    %c0_i32_0 = arith.constant 0 : i32
    %c0_i32_1 = arith.constant 0 : i32
    return %c0_i32, %c0_i32_0 : i32, i32
  }
  func.func @transform_3(%arg0: i32, %arg1: i32) -> (i32, i32) {
    %c0_i32 = arith.constant 0 : i32
    %c0_i32_0 = arith.constant 0 : i32
    %c0_i32_1 = arith.constant 0 : i32
    return %c0_i32, %c0_i32_0 : i32, i32
  }
  func.func @transform_4(%arg0: i32, %arg1: i32) -> (i32, i32, i32) {
    %c0_i32 = arith.constant 0 : i32
    %c0_i32_0 = arith.constant 0 : i32
    %c0_i32_1 = arith.constant 0 : i32
    return %arg0, %c0_i32, %c0_i32_0 : i32, i32, i32
  }
  func.func @transform_5(%arg0: i32, %arg1: i32) -> (i32, i32, i32) {
    %c0_i32 = arith.constant 0 : i32
    %c0_i32_0 = arith.constant 0 : i32
    return %arg0, %arg1, %c0_i32 : i32, i32, i32
  }
}

</mosaic_0001>

<llo_original>
// kernel: cross_view_attention.1
$region0: #{cross_view_attention.1}
  #allocation0 [shape = 'u32[]', space=smem, size = 0x4, offset = 0x4, fixed_abs, tag = 'smem constant byte address 0x4 - core index']
  #allocation1 [shape = 'u32[144,128]{1,0:T(1,128)}', space=vmem, size = 0x12000, scoped, tag = 'internal scratch']
  %s0 = inlined_call_operand.vmem [shape: f32[2,8,128], index: 0, kind: input, shape index: {}, may-alias: {0,1}]
  %s1 = inlined_call_operand.vmem [shape: f32[2,8,128], index: 1, kind: input, shape index: {}, may-alias: {0,1}]
  %s2 = inlined_call_operand.vmem [shape: f32[128,128], index: 2, kind: input, shape index: {}]
  %s3 = inlined_call_operand.hbm [shape: f32[128,128], index: 3, kind: input, shape index: {}]
  %s4 = inlined_call_operand.vmem [shape: f32[2,8,128], index: 4, kind: input, shape index: {}]
  %s5 = inlined_call_operand.vmem [shape: f32[2,8,128], index: 5, kind: output, shape index: {}]
  %s6 = sld [smem:[#allocation0]]
  $region57: #{cross_view_attention.1} parent=0
    _
  %s8 = ssub.s32 1, %s6
  %s9 = scalar_select 0, %s8, %s6
  $region1: #{cross_view_attention.1} parent=0
    #allocation2 [shape = 'u8[65536]{0}', space=vmem, size = 0x10000, scoped, tag = 'input window, operand 3, single buffered']
    #allocation3 [shape = 's32[2]{0}', space=sflag, size = 0x8, scoped, tag = 'scoped memory for cross_view_attention.1']
    %10 = vsyncpa [#allocation3], 0
    loop: start=0, step=1, limit=4
    $region2: #{cross_view_attention.1} parent=1 // loop_pre_header
      _
    $region3: #{cross_view_attention.1} parent=1 // loop_header
      %s12 = sphi 0, %s16
      %p13 = scmp.ge.s32.totalorder %s12, 4
      %s19 = sphi 0, %s31
      %s20 = sphi 0, %s27
      %s21 = sphi 0, %s19
      %s22 = sphi 0, %s20
      %s23 = sphi 0, %s21
      %s24 = sphi 0, %s22
      %s36 = sphi 0, %s38
      %s39 = sphi 0, %s36
      %s40 = sphi 0, %s39
      %s56 = sphi 0, %s40
      %s66 = sphi 0, %s68
      %s69 = sphi 0, %s66
      %s70 = sphi 0, %s69
      %s86 = sphi 0, %s70
      %s90 = sphi 0, %s90
      %s92 = sphi 0, %s90
      %s93 = sphi 0, %s92
      %s107 = sphi 0, %s93
      %s111 = sphi 0, %s111
      %s113 = sphi 0, %s111
      %s114 = sphi 0, %s113
      %s128 = sphi 0, %s114
      %s134 = sphi 0, %s136
      %s137 = sphi 0, %s134
      %s138 = sphi 0, %s137
      %s154 = sphi 0, %s138
      %s162 = sphi 0, %s164
      %s165 = sphi 0, %s162
      %s166 = sphi 0, %s165
      %s182 = sphi 0, %s166
    $region4: #{cross_view_attention.1} parent=1 // loop_header_branch
      %15 = sbr.rel (%p13) target = $region8
    $region5: #{cross_view_attention.1} parent=1 // loop_body
      %s17 = ssub.s32 %s12, 1
      %s18 = ssub.s32 %s12, 2
      %s25 = sadd.s32 1, %s20
      %p26 = scmp.ge.s32.totalorder %s25, 1
      %s27 = scalar_select %p26, 0, %s25
      %s28 = sadd.s32 1, %s19
      %s29 = scalar_select %p26, %s28, %s19
      %p30 = scmp.ge.s32.totalorder %s29, 2
      %s31 = scalar_select %p30, 0, %s29
      %s32 = ssub.s32 %s19, %s31
      %s33 = ssub.s32 %s20, %s27
      %s34 = sor.u32 %s32, %s33
      %p35 = scmp.eq.s32.totalorder %s34, 0
      %s37 = sadd.s32 %s36, 1
      %s38 = scalar_select %p35, %s36, %s37
      %p41 = pneg %p35
      %p42 = scmp.eq.s32.totalorder %s12, 1
      %p43 = por %p41, %p42
      %p44 = scmp.ne.s32.totalorder %s36, %s39
      %p45 = scmp.eq.s32.totalorder %s12, 0
      %p46 = por %p44, %p45
      %p47 = scmp.ne.s32.totalorder %s36, %s39
      %p48 = scmp.eq.s32.totalorder %s17, 1
      %p49 = por %p47, %p48
      %p50 = scmp.ne.s32.totalorder %s39, %s40
      %p51 = scmp.eq.s32.totalorder %s17, 0
      %p52 = por %p50, %p51
      %p53 = scmp.ne.s32.totalorder %s39, %s40
      %p54 = scmp.eq.s32.totalorder %s18, 1
      %p55 = por %p53, %p54
      %p57 = scmp.ne.s32.totalorder %s40, %s56
      %p58 = scmp.eq.s32.totalorder %s18, 0
      %p59 = por %p57, %p58
      %s60 = ssub.s32 1, %s19
      %s61 = ssub.s32 1, %s31
      %s62 = ssub.s32 %s60, %s61
      %s63 = ssub.s32 %s20, %s27
      %s64 = sor.u32 %s62, %s63
      %p65 = scmp.eq.s32.totalorder %s64, 0
      %s67 = sadd.s32 %s66, 1
      %s68 = scalar_select %p65, %s66, %s67
      %p71 = pneg %p65
      %p72 = scmp.eq.s32.totalorder %s12, 1
      %p73 = por %p71, %p72
      %p74 = scmp.ne.s32.totalorder %s66, %s69
      %p75 = scmp.eq.s32.totalorder %s12, 0
      %p76 = por %p74, %p75
      %p77 = scmp.ne.s32.totalorder %s66, %s69
      %p78 = scmp.eq.s32.totalorder %s17, 1
      %p79 = por %p77, %p78
      %p80 = scmp.ne.s32.totalorder %s69, %s70
      %p81 = scmp.eq.s32.totalorder %s17, 0
      %p82 = por %p80, %p81
      %p83 = scmp.ne.s32.totalorder %s69, %s70
      %p84 = scmp.eq.s32.totalorder %s18, 1
      %p85 = por %p83, %p84
      %p87 = scmp.ne.s32.totalorder %s70, %s86
      %p88 = scmp.eq.s32.totalorder %s18, 0
      %p89 = por %p87, %p88
      %s91 = sadd.s32 %s90, 1
      %p94 = scmp.eq.s32.totalorder %s12, 1
      %p95 = scmp.ne.s32.totalorder %s90, %s92
      %p96 = scmp.eq.s32.totalorder %s12, 0
      %p97 = por %p95, %p96
      %p98 = scmp.ne.s32.totalorder %s90, %s92
      %p99 = scmp.eq.s32.totalorder %s17, 1
      %p100 = por %p98, %p99
      %p101 = scmp.ne.s32.totalorder %s92, %s93
      %p102 = scmp.eq.s32.totalorder %s17, 0
      %p103 = por %p101, %p102
      %p104 = scmp.ne.s32.totalorder %s92, %s93
      %p105 = scmp.eq.s32.totalorder %s18, 1
      %p106 = por %p104, %p105
      %p108 = scmp.ne.s32.totalorder %s93, %s107
      %p109 = scmp.eq.s32.totalorder %s18, 0
      %p110 = por %p108, %p109
      %s112 = sadd.s32 %s111, 1
      %p115 = scmp.eq.s32.totalorder %s12, 1
      %p116 = scmp.ne.s32.totalorder %s111, %s113
      %p117 = scmp.eq.s32.totalorder %s12, 0
      %p118 = por %p116, %p117
      %p119 = scmp.ne.s32.totalorder %s111, %s113
      %p120 = scmp.eq.s32.totalorder %s17, 1
      %p121 = por %p119, %p120
      %p122 = scmp.ne.s32.totalorder %s113, %s114
      %p123 = scmp.eq.s32.totalorder %s17, 0
      %p124 = por %p122, %p123
      %p125 = scmp.ne.s32.totalorder %s113, %s114
      %p126 = scmp.eq.s32.totalorder %s18, 1
      %p127 = por %p125, %p126
      %p129 = scmp.ne.s32.totalorder %s114, %s128
      %p130 = scmp.eq.s32.totalorder %s18, 0
      %p131 = por %p129, %p130
      %s132 = ssub.s32 %s19, %s31
      %p133 = scmp.eq.s32.totalorder %s132, 0
      %s135 = sadd.s32 %s134, 1
      %s136 = scalar_select %p133, %s134, %s135
      %p139 = pneg %p133
      %p140 = scmp.eq.s32.totalorder %s12, 1
      %p141 = por %p139, %p140
      %p142 = scmp.ne.s32.totalorder %s134, %s137
      %p143 = scmp.eq.s32.totalorder %s12, 0
      %p144 = por %p142, %p143
      %p145 = scmp.ne.s32.totalorder %s134, %s137
      %p146 = scmp.eq.s32.totalorder %s17, 1
      %p147 = por %p145, %p146
      %p148 = scmp.ne.s32.totalorder %s137, %s138
      %p149 = scmp.eq.s32.totalorder %s17, 0
      %p150 = por %p148, %p149
      %p151 = scmp.ne.s32.totalorder %s137, %s138
      %p152 = scmp.eq.s32.totalorder %s18, 1
      %p153 = por %p151, %p152
      %p155 = scmp.ne.s32.totalorder %s138, %s154
      %p156 = scmp.eq.s32.totalorder %s18, 0
      %p157 = por %p155, %p156
      %s158 = ssub.s32 %s19, %s31
      %s159 = ssub.s32 %s20, %s27
      %s160 = sor.u32 %s158, %s159
      %p161 = scmp.eq.s32.totalorder %s160, 0
      %s163 = sadd.s32 %s162, 1
      %s164 = scalar_select %p161, %s162, %s163
      %p167 = pneg %p161
      %p168 = scmp.eq.s32.totalorder %s12, 1
      %p169 = por %p167, %p168
      %p170 = scmp.ne.s32.totalorder %s162, %s165
      %p171 = scmp.eq.s32.totalorder %s12, 0
      %p172 = por %p170, %p171
      %p173 = scmp.ne.s32.totalorder %s162, %s165
      %p174 = scmp.eq.s32.totalorder %s17, 1
      %p175 = por %p173, %p174
      %p176 = scmp.ne.s32.totalorder %s165, %s166
      %p177 = scmp.eq.s32.totalorder %s17, 0
      %p178 = por %p176, %p177
      %p179 = scmp.ne.s32.totalorder %s165, %s166
      %p180 = scmp.eq.s32.totalorder %s18, 1
      %p181 = por %p179, %p180
      %p183 = scmp.ne.s32.totalorder %s166, %s182
      %p184 = scmp.eq.s32.totalorder %s18, 0
      %p185 = por %p183, %p184
      %p186 = scmp.le.s32.totalorder 1, %s12
      %p187 = scmp.lt.s32.totalorder %s12, 3
      %p188 = pnand %p186, %p187
      %p189 = pneg %p188
      // Predicated region
      $region9: #{cross_view_attention.1} parent=5 // pred_check
        _
      $region10: #{cross_view_attention.1} parent=5 // pred_check_branch
        %191 = sbr.rel (%p188) target = $region12
      $region11: #{cross_view_attention.1} parent=5 // pred_region
        %s192 = ssub.s32 %s12, 1
        // Predicated region
        $region13: #{cross_view_attention.1} parent=11 // pred_check
          %p193 = pneg %p103
        $region14: #{cross_view_attention.1} parent=11 // pred_check_branch
          %195 = sbr.rel (%p193) target = $region16
        $region15: #{cross_view_attention.1} parent=11 // pred_region
          _
        $region16: #{cross_view_attention.1} parent=11 // pred_fallthru
          _
        // Predicated region
        $region17: #{cross_view_attention.1} parent=11 // pred_check
          %p196 = pneg %p124
        $region18: #{cross_view_attention.1} parent=11 // pred_check_branch
          %198 = sbr.rel (%p196) target = $region20
        $region19: #{cross_view_attention.1} parent=11 // pred_region
          %s200 = ssub.s32 2048, 2048
          %201 = vsyncadd [#allocation3], %s200
          %s202 = sshll.u32 [#allocation2], 4
          %s203 = int_to_ptr.vmem [resolvable:$true] %s202
          %208 = dma.hbm_to_vmem [thread:$0]  %s3, 2048, %s203, [#allocation3], 128, 128, 8
        $region20: #{cross_view_attention.1} parent=11 // pred_fallthru
          _
      $region12: #{cross_view_attention.1} parent=5 // pred_fallthru
        _
      %p209 = scmp.lt.s32.totalorder %s12, 2
      // Predicated region
      $region21: #{cross_view_attention.1} parent=5 // pred_check
        %p210 = pneg %p209
      $region22: #{cross_view_attention.1} parent=5 // pred_check_branch
        %212 = sbr.rel (%p210) target = $region24
      $region23: #{cross_view_attention.1} parent=5 // pred_region
        // Predicated region
        $region25: #{cross_view_attention.1} parent=23 // pred_check
          %p213 = pneg %p46
        $region26: #{cross_view_attention.1} parent=23 // pred_check_branch
          %215 = sbr.rel (%p213) target = $region28
        $region27: #{cross_view_attention.1} parent=23 // pred_region
          %p216 = scmp.lt.s32.totalorder %s19, 1
          %s217 = scalar_select %p216, %s19, 1
          %p218 = scmp.lt.s32.totalorder %s20, 0
          %s219 = scalar_select %p218, %s20, 0
          %s220 = sadd.s32 %s219, %s217
          %s221 = smul.addr %s220, 8
          %s222 = scalar_lea.vmem %s0, %s221
        $region28: #{cross_view_attention.1} parent=23 // pred_fallthru
          _
        // Predicated region
        $region29: #{cross_view_attention.1} parent=23 // pred_check
          %p223 = pneg %p76
        $region30: #{cross_view_attention.1} parent=23 // pred_check_branch
          %225 = sbr.rel (%p223) target = $region32
        $region31: #{cross_view_attention.1} parent=23 // pred_region
          %s226 = ssub.s32 1, %s19
          %p227 = scmp.lt.s32.totalorder %s226, 1
          %s228 = scalar_select %p227, %s226, 1
          %p229 = scmp.lt.s32.totalorder %s20, 0
          %s230 = scalar_select %p229, %s20, 0
          %s231 = sadd.s32 %s230, %s228
          %s232 = smul.addr %s231, 8
          %s233 = scalar_lea.vmem %s1, %s232
          %s234 = ssub.s32 1, %s19
        $region32: #{cross_view_attention.1} parent=23 // pred_fallthru
          _
        // Predicated region
        $region33: #{cross_view_attention.1} parent=23 // pred_check
          %p235 = pneg %p144
        $region34: #{cross_view_attention.1} parent=23 // pred_check_branch
          %237 = sbr.rel (%p235) target = $region36
        $region35: #{cross_view_attention.1} parent=23 // pred_region
          %p238 = scmp.lt.s32.totalorder %s19, 1
          %s239 = scalar_select %p238, %s19, 1
          %s240 = smul.addr %s239, 8
          %s241 = scalar_lea.vmem %s4, %s240
        $region36: #{cross_view_attention.1} parent=23 // pred_fallthru
          _
      $region24: #{cross_view_attention.1} parent=5 // pred_fallthru
        _
      %p242 = scmp.le.s32.totalorder 1, %s12
      %p243 = scmp.lt.s32.totalorder %s12, 3
      %p244 = pnand %p242, %p243
      %p245 = pneg %p244
      // Predicated region
      $region37: #{cross_view_attention.1} parent=5 // pred_check
        _
      $region38: #{cross_view_attention.1} parent=5 // pred_check_branch
        %247 = sbr.rel (%p244) target = $region40
      $region39: #{cross_view_attention.1} parent=5 // pred_region
        %s248 = ssub.s32 %s12, 1
        // Predicated region
        $region41: #{cross_view_attention.1} parent=39 // pred_check
          %p249 = pneg %p124
        $region42: #{cross_view_attention.1} parent=39 // pred_check_branch
          %251 = sbr.rel (%p249) target = $region44
        $region43: #{cross_view_attention.1} parent=39 // pred_region
          %252 = dma.done [#allocation3], 2048
        $region44: #{cross_view_attention.1} parent=39 // pred_fallthru
          _
        %p253 = scmp.lt.s32.totalorder %s21, 1
        %s254 = scalar_select %p253, %s21, 1
        %p255 = scmp.lt.s32.totalorder %s22, 0
        %s256 = scalar_select %p255, %s22, 0
        %s257 = sadd.s32 %s256, %s254
        %s258 = smul.addr %s257, 8
        %s259 = scalar_lea.vmem %s0, %s258
        %p260 = pneg %p52
        %p261 = pneg %p49
        %s262 = ssub.s32 1, %s21
        %p263 = scmp.lt.s32.totalorder %s262, 1
        %s264 = scalar_select %p263, %s262, 1
        %p265 = scmp.lt.s32.totalorder %s22, 0
        %s266 = scalar_select %p265, %s22, 0
        %s267 = sadd.s32 %s266, %s264
        %s268 = smul.addr %s267, 8
        %s269 = scalar_lea.vmem %s1, %s268
        %p270 = pneg %p82
        %p271 = pneg %p79
        %p272 = pneg %p103
        %p273 = pneg %p100
        %p274 = pneg %p124
        %p275 = pneg %p121
        %p276 = scmp.lt.s32.totalorder %s21, 1
        %s277 = scalar_select %p276, %s21, 1
        %s278 = smul.addr %s277, 8
        %s279 = scalar_lea.vmem %s4, %s278
        %p280 = pneg %p150
        %p281 = pneg %p147
        %p282 = pneg %p178
        %p283 = pneg %p175
        %p284 = scmp.lt.s32.totalorder %s21, 1
        %s285 = scalar_select %p284, %s21, 1
        %p286 = scmp.lt.s32.totalorder %s22, 0
        %s287 = scalar_select %p286, %s22, 0
        %s288 = sadd.s32 %s287, %s285
        %s289 = smul.addr %s288, 8
        %s290 = scalar_lea.vmem %s5, %s289
        %p291 = scmp.lt.s32.totalorder %s21, 1
        %s292 = scalar_select %p291, %s21, 1
        %p293 = scmp.lt.s32.totalorder %s22, 0
        %s294 = scalar_select %p293, %s22, 0
        %s295 = sadd.s32 %s294, %s292
        %s296 = smul.addr %s295, 8
        %s297 = scalar_lea.vmem %s0, %s296
        %s298 = ssub.s32 1, %s21
        %p299 = scmp.lt.s32.totalorder %s298, 1
        %s300 = scalar_select %p299, %s298, 1
        %p301 = scmp.lt.s32.totalorder %s22, 0
        %s302 = scalar_select %p301, %s22, 0
        %s303 = sadd.s32 %s302, %s300
        %s304 = smul.addr %s303, 8
        %s305 = scalar_lea.vmem %s1, %s304
        %s306 = ssub.s32 1, %s21
        %p307 = scmp.lt.s32.totalorder %s21, 1
        %s308 = scalar_select %p307, %s21, 1
        %s309 = smul.addr %s308, 8
        %s310 = scalar_lea.vmem %s4, %s309
        %p311 = scmp.lt.s32.totalorder %s21, 1
        %s312 = scalar_select %p311, %s21, 1
        %p313 = scmp.lt.s32.totalorder %s22, 0
        %s314 = scalar_select %p313, %s22, 0
        %s315 = sadd.s32 %s314, %s312
        %s316 = smul.addr %s315, 8
        %s317 = scalar_lea.vmem %s5, %s316
        %v318 = vld [vmem:[%s297] sm:$0xff]
        %v319 = vld [vmem:[%s305] sm:$0xff]
        %v320 = vld [vmem:[#allocation2] sm:$0xff]
        %v321 = vld [vmem:[#allocation2 + $0x8] sm:$0xff]
        %v322 = vld [vmem:[#allocation2 + $0x10] sm:$0xff]
        %v323 = vld [vmem:[#allocation2 + $0x18] sm:$0xff]
        %v324 = vld [vmem:[#allocation2 + $0x20] sm:$0xff]
        %v325 = vld [vmem:[#allocation2 + $0x28] sm:$0xff]
        %v326 = vld [vmem:[#allocation2 + $0x30] sm:$0xff]
        %v327 = vld [vmem:[#allocation2 + $0x38] sm:$0xff]
        %v328 = vld [vmem:[#allocation2 + $0x40] sm:$0xff]
        %v329 = vld [vmem:[#allocation2 + $0x48] sm:$0xff]
        %v330 = vld [vmem:[#allocation2 + $0x50] sm:$0xff]
        %v331 = vld [vmem:[#allocation2 + $0x58] sm:$0xff]
        %v332 = vld [vmem:[#allocation2 + $0x60] sm:$0xff]
        %v333 = vld [vmem:[#allocation2 + $0x68] sm:$0xff]
        %v334 = vld [vmem:[#allocation2 + $0x70] sm:$0xff]
        %v335 = vld [vmem:[#allocation2 + $0x78] sm:$0xff]
        %v336 = vld [vmem:[%s310] sm:$0x1]
        %v337 = vld [vmem:[%s310 + $0x1] sm:$0x1]
        %v338 = vld [vmem:[%s310 + $0x2] sm:$0x1]
        %v339 = vld [vmem:[%s2] sm:$0xff]
        %v340 = vld [vmem:[%s2 + $0x8] sm:$0xff]
        %v341 = vld [vmem:[%s2 + $0x10] sm:$0xff]
        %v342 = vld [vmem:[%s2 + $0x18] sm:$0xff]
        %v343 = vld [vmem:[%s2 + $0x20] sm:$0xff]
        %v344 = vld [vmem:[%s2 + $0x28] sm:$0xff]
        %v345 = vld [vmem:[%s2 + $0x30] sm:$0xff]
        %v346 = vld [vmem:[%s2 + $0x38] sm:$0xff]
        %v347 = vld [vmem:[%s2 + $0x40] sm:$0xff]
        %v348 = vld [vmem:[%s2 + $0x48] sm:$0xff]
        %v349 = vld [vmem:[%s2 + $0x50] sm:$0xff]
        %v350 = vld [vmem:[%s2 + $0x58] sm:$0xff]
        %v351 = vld [vmem:[%s2 + $0x60] sm:$0xff]
        %v352 = vld [vmem:[%s2 + $0x68] sm:$0xff]
        %v353 = vld [vmem:[%s2 + $0x70] sm:$0xff]
        %v354 = vld [vmem:[%s2 + $0x78] sm:$0xff]
        %v355 = vlaneseq
        %v356 = vshrl.u32 %v355, 7
        %v357 = vsub.s32 0, %v356
        %v358 = vrot.slane %v336, %v357
        %359 = vmatprep.subr.mxu0 0.0
        %360 = vmatpush1.msra.mxu0 %v339
        %361 = vmatprep.subr.mxu0 0.0
        %362 = vmatpush1.msra.mxu0 %v340
        %363 = vmatprep.subr.mxu0 0.0
        %364 = vmatpush1.msra.mxu0 %v341
        %365 = vmatprep.subr.mxu0 0.0
        %366 = vmatpush1.msra.mxu0 %v342
        %367 = vmatprep.subr.mxu0 0.0
        %368 = vmatpush1.msra.mxu0 %v343
        %369 = vmatprep.subr.mxu0 0.0
        %370 = vmatpush1.msra.mxu0 %v344
        %371 = vmatprep.subr.mxu0 0.0
        %372 = vmatpush1.msra.mxu0 %v345
        %373 = vmatprep.subr.mxu0 0.0
        %374 = vmatpush1.msra.mxu0 %v346
        %375 = vmatprep.subr.mxu0 0.0
        %376 = vmatpush1.msra.mxu0 %v347
        %377 = vmatprep.subr.mxu0 0.0
        %378 = vmatpush1.msra.mxu0 %v348
        %379 = vmatprep.subr.mxu0 0.0
        %380 = vmatpush1.msra.mxu0 %v349
        %381 = vmatprep.subr.mxu0 0.0
        %382 = vmatpush1.msra.mxu0 %v350
        %383 = vmatprep.subr.mxu0 0.0
        %384 = vmatpush1.msra.mxu0 %v351
        %385 = vmatprep.subr.mxu0 0.0
        %386 = vmatpush1.msra.mxu0 %v352
        %387 = vmatprep.subr.mxu0 0.0
        %388 = vmatpush1.msra.mxu0 %v353
        %389 = vmatprep.subr.mxu0 0.0
        %390 = vmatpush1.msra.mxu0 %v354
        %391 = vmatprep.subr.mxu0 0.0
        %392 = vmatpush1.msra.mxu0 0.0
        %393 = vmatprep.subr.mxu0 0.0
        %394 = vmatpush1.msra.mxu0 0.0
        %395 = vmatprep.subr.mxu0 0.0
        %396 = vmatpush1.msra.mxu0 0.0
        %397 = vmatprep.subr.mxu0 0.0
        %398 = vmatpush1.msra.mxu0 0.0
        %399 = vmatprep.subr.mxu0 0.0
        %400 = vmatpush1.msra.mxu0 0.0
        %401 = vmatprep.subr.mxu0 0.0
        %402 = vmatpush1.msra.mxu0 0.0
        %403 = vmatprep.subr.mxu0 0.0
        %404 = vmatpush1.msra.mxu0 0.0
        %405 = vmatprep.subr.mxu0 0.0
        %406 = vmatpush1.msra.mxu0 0.0
        %407 = vmatprep.subr.mxu0 0.0
        %408 = vmatpush1.msra.mxu0 0.0
        %409 = vmatprep.subr.mxu0 0.0
        %410 = vmatpush1.msra.mxu0 0.0
        %411 = vmatprep.subr.mxu0 0.0
        %412 = vmatpush1.msra.mxu0 0.0
        %413 = vmatprep.subr.mxu0 0.0
        %414 = vmatpush1.msra.mxu0 0.0
        %415 = vmatprep.subr.mxu0 0.0
        %416 = vmatpush1.msra.mxu0 0.0
        %417 = vmatprep.subr.mxu0 0.0
        %418 = vmatpush1.msra.mxu0 0.0
        %419 = vmatprep.subr.mxu0 0.0
        %420 = vmatpush1.msra.mxu0 0.0
        %421 = vmatprep.subr.mxu0 0.0
        %422 = vmatpush1.msra.mxu0 0.0
        %423 = vmatprep.mubr.f32.mxu0 0.0
        %424 = vmatmul.mubr.f32.gmra.mrb[0].mxu0 %v319
        %v425 = vpop.f32.mrb[0].mxu0
        %v426 = vadd.f32 %v358, %v425
        %v427 = vpop.f32.mrb[0].mxu0
        %428 = vdwg.mxu0
        %v429 = vadd.f32 %v426, %v318
        %430 = vmatprep.subr.mxu0 0.0
        %431 = vmatpush1.msra.mxu0 %v320
        %432 = vmatprep.subr.mxu0 0.0
        %433 = vmatpush1.msra.mxu0 %v321
        %434 = vmatprep.subr.mxu0 0.0
        %435 = vmatpush1.msra.mxu0 %v322
        %436 = vmatprep.subr.mxu0 0.0
        %437 = vmatpush1.msra.mxu0 %v323
        %438 = vmatprep.subr.mxu0 0.0
        %439 = vmatpush1.msra.mxu0 %v324
        %440 = vmatprep.subr.mxu0 0.0
        %441 = vmatpush1.msra.mxu0 %v325
        %442 = vmatprep.subr.mxu0 0.0
        %443 = vmatpush1.msra.mxu0 %v326
        %444 = vmatprep.subr.mxu0 0.0
        %445 = vmatpush1.msra.mxu0 %v327
        %446 = vmatprep.subr.mxu0 0.0
        %447 = vmatpush1.msra.mxu0 %v328
        %448 = vmatprep.subr.mxu0 0.0
        %449 = vmatpush1.msra.mxu0 %v329
        %450 = vmatprep.subr.mxu0 0.0
        %451 = vmatpush1.msra.mxu0 %v330
        %452 = vmatprep.subr.mxu0 0.0
        %453 = vmatpush1.msra.mxu0 %v331
        %454 = vmatprep.subr.mxu0 0.0
        %455 = vmatpush1.msra.mxu0 %v332
        %456 = vmatprep.subr.mxu0 0.0
        %457 = vmatpush1.msra.mxu0 %v333
        %458 = vmatprep.subr.mxu0 0.0
        %459 = vmatpush1.msra.mxu0 %v334
        %460 = vmatprep.subr.mxu0 0.0
        %461 = vmatpush1.msra.mxu0 %v335
        %462 = vmatprep.subr.mxu0 0.0
        %463 = vmatpush1.msra.mxu0 0.0
        %464 = vmatprep.subr.mxu0 0.0
        %465 = vmatpush1.msra.mxu0 0.0
        %466 = vmatprep.subr.mxu0 0.0
        %467 = vmatpush1.msra.mxu0 0.0
        %468 = vmatprep.subr.mxu0 0.0
        %469 = vmatpush1.msra.mxu0 0.0
        %470 = vmatprep.subr.mxu0 0.0
        %471 = vmatpush1.msra.mxu0 0.0
        %472 = vmatprep.subr.mxu0 0.0
        %473 = vmatpush1.msra.mxu0 0.0
        %474 = vmatprep.subr.mxu0 0.0
        %475 = vmatpush1.msra.mxu0 0.0
        %476 = vmatprep.subr.mxu0 0.0
        %477 = vmatpush1.msra.mxu0 0.0
        %478 = vmatprep.subr.mxu0 0.0
        %479 = vmatpush1.msra.mxu0 0.0
        %480 = vmatprep.subr.mxu0 0.0
        %481 = vmatpush1.msra.mxu0 0.0
        %482 = vmatprep.subr.mxu0 0.0
        %483 = vmatpush1.msra.mxu0 0.0
        %484 = vmatprep.subr.mxu0 0.0
        %485 = vmatpush1.msra.mxu0 0.0
        %486 = vmatprep.subr.mxu0 0.0
        %487 = vmatpush1.msra.mxu0 0.0
        %488 = vmatprep.subr.mxu0 0.0
        %489 = vmatpush1.msra.mxu0 0.0
        %490 = vmatprep.subr.mxu0 0.0
        %491 = vmatpush1.msra.mxu0 0.0
        %492 = vmatprep.subr.mxu0 0.0
        %493 = vmatpush1.msra.mxu0 0.0
        %494 = vmatprep.mubr.f32.mxu0 0.0
        %495 = vmatmul.mubr.f32.gmra.mrb[0].mxu0 %v429
        %v496 = vpop.f32.mrb[0].mxu0
        %v497 = vadd.f32 0.0, %v496
        %v498 = vpop.f32.mrb[0].mxu0
        %499 = vdwg.mxu0
        %v500 = vsub.f32 %v429, %v497
        %v501 = vmul.f32 %v500, %v500
        %502 = vmatprep.subr.mxu0 0.0
        %503 = vmatpush1.msra.mxu0 %v320
        %504 = vmatprep.subr.mxu0 0.0
        %505 = vmatpush1.msra.mxu0 %v321
        %506 = vmatprep.subr.mxu0 0.0
        %507 = vmatpush1.msra.mxu0 %v322
        %508 = vmatprep.subr.mxu0 0.0
        %509 = vmatpush1.msra.mxu0 %v323
        %510 = vmatprep.subr.mxu0 0.0
        %511 = vmatpush1.msra.mxu0 %v324
        %512 = vmatprep.subr.mxu0 0.0
        %513 = vmatpush1.msra.mxu0 %v325
        %514 = vmatprep.subr.mxu0 0.0
        %515 = vmatpush1.msra.mxu0 %v326
        %516 = vmatprep.subr.mxu0 0.0
        %517 = vmatpush1.msra.mxu0 %v327
        %518 = vmatprep.subr.mxu0 0.0
        %519 = vmatpush1.msra.mxu0 %v328
        %520 = vmatprep.subr.mxu0 0.0
        %521 = vmatpush1.msra.mxu0 %v329
        %522 = vmatprep.subr.mxu0 0.0
        %523 = vmatpush1.msra.mxu0 %v330
        %524 = vmatprep.subr.mxu0 0.0
        %525 = vmatpush1.msra.mxu0 %v331
        %526 = vmatprep.subr.mxu0 0.0
        %527 = vmatpush1.msra.mxu0 %v332
        %528 = vmatprep.subr.mxu0 0.0
        %529 = vmatpush1.msra.mxu0 %v333
        %530 = vmatprep.subr.mxu0 0.0
        %531 = vmatpush1.msra.mxu0 %v334
        %532 = vmatprep.subr.mxu0 0.0
        %533 = vmatpush1.msra.mxu0 %v335
        %534 = vmatprep.subr.mxu0 0.0
        %535 = vmatpush1.msra.mxu0 0.0
        %536 = vmatprep.subr.mxu0 0.0
        %537 = vmatpush1.msra.mxu0 0.0
        %538 = vmatprep.subr.mxu0 0.0
        %539 = vmatpush1.msra.mxu0 0.0
        %540 = vmatprep.subr.mxu0 0.0
        %541 = vmatpush1.msra.mxu0 0.0
        %542 = vmatprep.subr.mxu0 0.0
        %543 = vmatpush1.msra.mxu0 0.0
        %544 = vmatprep.subr.mxu0 0.0
        %545 = vmatpush1.msra.mxu0 0.0
        %546 = vmatprep.subr.mxu0 0.0
        %547 = vmatpush1.msra.mxu0 0.0
        %548 = vmatprep.subr.mxu0 0.0
        %549 = vmatpush1.msra.mxu0 0.0
        %550 = vmatprep.subr.mxu0 0.0
        %551 = vmatpush1.msra.mxu0 0.0
        %552 = vmatprep.subr.mxu0 0.0
        %553 = vmatpush1.msra.mxu0 0.0
        %554 = vmatprep.subr.mxu0 0.0
        %555 = vmatpush1.msra.mxu0 0.0
        %556 = vmatprep.subr.mxu0 0.0
        %557 = vmatpush1.msra.mxu0 0.0
        %558 = vmatprep.subr.mxu0 0.0
        %559 = vmatpush1.msra.mxu0 0.0
        %560 = vmatprep.subr.mxu0 0.0
        %561 = vmatpush1.msra.mxu0 0.0
        %562 = vmatprep.subr.mxu0 0.0
        %563 = vmatpush1.msra.mxu0 0.0
        %564 = vmatprep.subr.mxu0 0.0
        %565 = vmatpush1.msra.mxu0 0.0
        %566 = vmatprep.mubr.f32.mxu0 0.0
        %567 = vmatmul.mubr.f32.gmra.mrb[0].mxu0 %v501
        %v568 = vpop.f32.mrb[0].mxu0
        %v569 = vadd.f32 1e-05, %v568
        %v570 = vpop.f32.mrb[0].mxu0
        %571 = vdwg.mxu0
        %v572 = vrsqrt.pop %v569
        %v573 = vmul.f32 %v500, %v572
        %v574 = vlaneseq
        %v575 = vshrl.u32 %v574, 7
        %v576 = vsub.s32 0, %v575
        %v577 = vrot.slane %v337, %v576
        %v578 = vmul.f32 %v573, %v577
        %v579 = vlaneseq
        %v580 = vshrl.u32 %v579, 7
        %v581 = vsub.s32 0, %v580
        %v582 = vrot.slane %v338, %v581
        %v583 = vadd.f32 %v578, %v582
        %584 = vst [vmem:[%s317] sm:$0xff] %v583
        %p585 = scmp.lt.s32.totalorder %s21, 1
        %s586 = scalar_select %p585, %s21, 1
        %p587 = scmp.lt.s32.totalorder %s22, 0
        %s588 = scalar_select %p587, %s22, 0
        %s589 = sadd.s32 %s588, %s586
        %s590 = smul.addr %s589, 8
        %s591 = scalar_lea.vmem %s5, %s590
        // Predicated region
        $region45: #{cross_view_attention.1} parent=39 // pred_check
          %p592 = pneg %p175
        $region46: #{cross_view_attention.1} parent=39 // pred_check_branch
          %594 = sbr.rel (%p592) target = $region48
        $region47: #{cross_view_attention.1} parent=39 // pred_region
          _
        $region48: #{cross_view_attention.1} parent=39 // pred_fallthru
          _
      $region40: #{cross_view_attention.1} parent=5 // pred_fallthru
        _
      %p595 = scmp.le.s32.totalorder 2, %s12
      // Predicated region
      $region49: #{cross_view_attention.1} parent=5 // pred_check
        %p596 = pneg %p595
      $region50: #{cross_view_attention.1} parent=5 // pred_check_branch
        %598 = sbr.rel (%p596) target = $region52
      $region51: #{cross_view_attention.1} parent=5 // pred_region
        %s599 = ssub.s32 %s12, 2
        // Predicated region
        $region53: #{cross_view_attention.1} parent=51 // pred_check
          %p600 = pneg %p181
        $region54: #{cross_view_attention.1} parent=51 // pred_check_branch
          %602 = sbr.rel (%p600) target = $region56
        $region55: #{cross_view_attention.1} parent=51 // pred_region
          %p603 = scmp.lt.s32.totalorder %s23, 1
          %s604 = scalar_select %p603, %s23, 1
          %p605 = scmp.lt.s32.totalorder %s24, 0
          %s606 = scalar_select %p605, %s24, 0
          %s607 = sadd.s32 %s606, %s604
          %s608 = smul.addr %s607, 8
          %s609 = scalar_lea.vmem %s5, %s608
        $region56: #{cross_view_attention.1} parent=51 // pred_fallthru
          _
      $region52: #{cross_view_attention.1} parent=5 // pred_fallthru
        _
    $region6: #{cross_view_attention.1} parent=1 // loop_footer
      %s16 = sadd.s32 1, %s12
    $region7: #{cross_view_attention.1} parent=1 // loop_footer_branch
      %11 = sbr.rel target = $region3
    $region8: #{cross_view_attention.1} parent=1 // loop_exit
      _
    %610 = vsyncpa [#allocation3], 1
    %s611 = scalar_lea.sflag [#allocation3], 1
    %612 = vsyncpa %s611, 1

</llo_original>
